<compile_context>
chip_gen: v5e
topology: v5e:2x2
jax: 0.10.0
libtpu: 0.0.40
codegen_flags: <defaults>
</compile_context>

<pallas_src>
import functools

import jax
import jax.numpy as jnp
from jax.experimental import pallas as pl
from jax.experimental.pallas import tpu as pltpu


def _round_up(v: int, m: int) -> int:
    return (v + m - 1) // m * m


def _linear_head_kernel(x_ref, mask_ref, invden_ref, b1_ref, b2_ref,
                        w1_hbm, w2_hbm, out_ref,
                        w1_vmem, w2_vmem, dma_sem, acc_ref, *, nonlin: bool):
    """Grid = (B tiles, S tiles); S is the reduction ("arbitrary") axis."""
    s = pl.program_id(1)
    TB, TS, D = x_ref.shape

    @pl.when(s == 0)
    def _init():
        acc_ref[...] = jnp.zeros_like(acc_ref)
        # Single-buffered weight residency: one DMA per batch tile (re-issued per
        # tile so it stays correct when the parallel B axis is sharded across
        # TensorCores).  w2 (and w1 on the nonlin=False path) is waited on only
        # at finalize, so the copy overlaps the whole S stream.
        pltpu.make_async_copy(w1_hbm, w1_vmem, dma_sem.at[0]).start()
        pltpu.make_async_copy(w2_hbm, w2_vmem, dma_sem.at[1]).start()
        if nonlin:
            pltpu.make_async_copy(w1_hbm, w1_vmem, dma_sem.at[0]).wait()

    m = mask_ref[...]                                   # (TB, TS), lane-dense

    if nonlin:
        # Bias + SiLU must be applied per token before pooling.  MXU consumes the
        # native dtype (bf16 if supplied); accumulation / SiLU / mask math in f32.
        x2d = x_ref[...].reshape(TB * TS, D)
        h = jnp.dot(x2d, w1_vmem[...], preferred_element_type=jnp.float32)
        h = h + b1_ref[...]
        h = h * jax.nn.sigmoid(h)                       # SiLU (VPU + EUP)
        h = h.reshape(TB, TS, D) * m[:, :, None].astype(jnp.float32)
        acc_ref[...] += jnp.sum(h, axis=1)
    else:
        # lin1 commutes with the masked mean when there is no nonlinearity:
        # accumulate only the masked token sum, run lin1 once at finalize.
        xm = (x_ref[...] * m[:, :, None]).astype(jnp.float32)
        acc_ref[...] += jnp.sum(xm, axis=1)

    @pl.when(s == pl.num_programs(1) - 1)
    def _finalize():
        if not nonlin:
            pltpu.make_async_copy(w1_hbm, w1_vmem, dma_sem.at[0]).wait()
        pltpu.make_async_copy(w2_hbm, w2_vmem, dma_sem.at[1]).wait()
        # NOTE: a batch row whose mask is entirely False has inv_den == inf and
        # yields NaN, matching the PyTorch module's behaviour.
        pooled = acc_ref[...] * invden_ref[...]          # (TB, D) f32
        if not nonlin:
            pooled = (jnp.dot(pooled.astype(w1_vmem.dtype), w1_vmem[...],
                              preferred_element_type=jnp.float32)
                      + b1_ref[...])
        out = (jnp.dot(pooled.astype(w2_vmem.dtype), w2_vmem[...],
                       preferred_element_type=jnp.float32)
               + b2_ref[...])
        out_ref[...] = out.astype(out_ref.dtype)


def linear_head(x, w1, b1, w2, b2, mask=None, nonlin=False,
                *, max_tb=None, max_ts=None):
    """x: (B, S, D); w1: (D, D); b1: (1, D); w2: (D, O); b2: (1, O);
    mask: optional (B, S) bool.  Returns (B, O) == torch LinearHead.forward.
    max_tb / max_ts are tuning/test overrides for the tile sizes."""
    B, S, D = x.shape
    O = w2.shape[1]
    itemsize = x.dtype.itemsize

    # Cast weights to the activation dtype so the MXU runs native-rate passes
    # (f32 accumulation is kept via preferred_element_type in the kernel).
    if x.dtype == jnp.bfloat16:
        w1 = w1.astype(jnp.bfloat16)
        w2 = w2.astype(jnp.bfloat16)
    b1 = b1.reshape(1, D).astype(jnp.float32)
    b2 = b2.reshape(1, O).astype(jnp.float32)

    # --- lane-dense lin2 output: pad O to a multiple of 128 -------------------
    O_p = _round_up(O, 128)
    if O_p != O:
        w2 = jnp.pad(w2, ((0, 0), (0, O_p - O)))
        b2 = jnp.pad(b2, ((0, 0), (0, O_p - O)))

    # --- generation-aware VMEM budget -----------------------------------------
    try:
        vmem_cap = int(pltpu.get_tpu_info().vmem_capacity_bytes)
    except Exception:
        vmem_cap = 64 << 20                 # conservative (v7x-sized) fallback
    vmem_budget = (vmem_cap * 4) // 5       # ~51 MiB on v7x, ~102 MiB on v5e/v6e

    # --- batch tile ------------------------------------------------------------
    tb_cap = 8 if nonlin else 128           # nonlin lin1 is per-token: MXU already fed
    if max_tb is not None:
        tb_cap = max_tb
    if B <= tb_cap:
        TB, B_pad = B, B                    # full-B block (outer dim, no 8/128 rule)
    else:
        TB = tb_cap
        B_pad = _round_up(B, TB)

    # --- sequence tile (biggest that fits the remaining VMEM budget) ----------
    w_item = w1.dtype.itemsize
    w_bytes = D * D * w_item + D * O_p * w_item          # single-buffered scratch
    fixed = (w_bytes + TB * D * 4                        # acc
             + 2 * TB * O_p * itemsize                   # out (double-buffered)
             + 2 * TB * 128 * 4                          # inv_den (lane-padded)
             + 2 * 8 * (D + O_p) * 4)                    # biases (sublane-padded)
    avail = max(vmem_budget - fixed, 2 << 20)
    per_buf = avail // 4                    # x double-buffered; keep headroom
    ts_cap = per_buf // max(1, TB * D * itemsize)
    if nonlin:
        # bound the live f32 lin1 intermediate (TB*TS*D*4) to ~6 MiB
        ts_cap = min(ts_cap, max(1, (6 << 20) // (TB * D * 4)))
    if max_ts is not None:
        ts_cap = min(ts_cap, max_ts)
    ts_cap = min(ts_cap, 4096)
    if S <= max(ts_cap, 128):
        TS, S_pad = S, S                    # single S tile: full dim, no padding
    else:
        TS = max(128, ts_cap // 128 * 128)  # tiled S: lane-dense mask block needs %128
        S_pad = _round_up(S, TS)
    grid = (B_pad // TB, S_pad // TS)

    # --- mask (lane-dense, activation dtype) + precomputed 1/denominator ------
    if mask is None:
        mask_f = jnp.ones((B, S), x.dtype)
        den = jnp.full((B, 1), float(S), jnp.float32)
    else:
        mask_f = mask.astype(x.dtype)
        den = mask.astype(jnp.float32).sum(axis=1, keepdims=True)
    inv_den = 1.0 / den                     # all-False row -> inf -> NaN (as torch)

    if S_pad != S or B_pad != B:            # padding folded into the mask
        x = jnp.pad(x, ((0, B_pad - B), (0, S_pad - S), (0, 0)))
        mask_f = jnp.pad(mask_f, ((0, B_pad - B), (0, S_pad - S)))
    if B_pad != B:
        inv_den = jnp.pad(inv_den, ((0, B_pad - B), (0, 0)), constant_values=1.0)

    # --- accurate VMEM request (no double counting), capped at the budget ------
    vmem_used = (2 * TB * TS * D * itemsize              # x (double-buffered)
                 + 2 * TB * _round_up(TS, 128) * itemsize  # mask
                 + 2 * TB * 128 * 4                      # inv_den
                 + 2 * 8 * (D + O_p) * 4                 # biases
                 + 2 * TB * O_p * itemsize               # out
                 + w_bytes + TB * D * 4)                 # weight scratch + acc
    if nonlin:
        vmem_used += TB * TS * D * 4                     # live f32 lin1 activations
    vmem_limit = int(min(vmem_budget,
                         max(vmem_used + vmem_used // 2, 32 << 20)))

    kernel = functools.partial(_linear_head_kernel, nonlin=nonlin)

    out_p = pl.pallas_call(
        kernel,
        out_shape=jax.ShapeDtypeStruct((B_pad, O_p), x.dtype),
        grid_spec=pltpu.PrefetchScalarGridSpec(
            num_scalar_prefetch=0,
            grid=grid,
            in_specs=[
                pl.BlockSpec((TB, TS, D), lambda b, s: (b, s, 0)),   # x
                pl.BlockSpec((TB, TS), lambda b, s: (b, s)),         # mask
                pl.BlockSpec((TB, 1), lambda b, s: (b, 0)),          # 1 / denominator
                pl.BlockSpec((1, D), lambda b, s: (0, 0)),           # b1
                pl.BlockSpec((1, O_p), lambda b, s: (0, 0)),         # b2
                pl.BlockSpec(memory_space=pl.ANY),                   # w1 (stays in HBM)
                pl.BlockSpec(memory_space=pl.ANY),                   # w2 (stays in HBM)
            ],
            out_specs=pl.BlockSpec((TB, O_p), lambda b, s: (b, 0)),
            scratch_shapes=[
                pltpu.VMEM((D, D), w1.dtype),       # w1 resident (single-buffered)
                pltpu.VMEM((D, O_p), w2.dtype),     # w2 resident (single-buffered)
                pltpu.SemaphoreType.DMA((2,)),      # weight-copy semaphores
                pltpu.VMEM((TB, D), jnp.float32),   # running masked token sum
            ],
        ),
        compiler_params=pltpu.CompilerParams(
            dimension_semantics=("parallel", "arbitrary"),
            vmem_limit_bytes=vmem_limit,
        ),
    )(x, mask_f, inv_den, b1, b2, w1, w2)

    return out_p[:B, :O]


def _reference(x, w1, b1, w2, b2, mask=None, nonlin=False):
    h = jnp.einsum("bsd,de->bse", x.astype(jnp.float32),
                   w1.astype(jnp.float32)) + b1.reshape(1, 1, -1).astype(jnp.float32)
    if nonlin:
        h = h * jax.nn.sigmoid(h)
    if mask is None:
        pooled = h.mean(axis=1)
    else:
        m = mask.astype(jnp.float32)
        pooled = (h * m[:, :, None]).sum(axis=1) / m.sum(axis=1, keepdims=True)
    return pooled @ w2.astype(jnp.float32) + b2.reshape(1, -1).astype(jnp.float32)


def _make_inputs(B, S, D, O, dtype):
    ks = jax.random.split(jax.random.PRNGKey(0), 6)
    x = jax.random.normal(ks[0], (B, S, D), jnp.float32).astype(dtype)
    # every batch row has at least one valid token
    mask = jax.random.bernoulli(ks[1], 0.7, (B, S)).at[:, 0].set(True)
    lim = 1.0 / (D ** 0.5)   # torch nn.Linear default init range
    w1 = jax.random.uniform(ks[2], (D, D), jnp.float32, -lim, lim)
    b1 = jax.random.uniform(ks[3], (1, D), jnp.float32, -lim, lim)
    w2 = jax.random.uniform(ks[4], (D, O), jnp.float32, -lim, lim)
    b2 = jax.random.uniform(ks[5], (1, O), jnp.float32, -lim, lim)
    return x, mask, w1, b1, w2, b2


if __name__ == "__main__":
    # 1) Small, deliberately unaligned shapes (exercise O/B padding paths).
    x, mask, w1, b1, w2, b2 = _make_inputs(2, 10, 32, 16, jnp.float32)
    for nonlin in (False, True):
        for m in (mask, None):
            out = jax.block_until_ready(
                linear_head(x, w1, b1, w2, b2, mask=m, nonlin=nonlin))
            ref = _reference(x, w1, b1, w2, b2, mask=m, nonlin=nonlin)
            assert out.shape == (2, 16)
            assert jnp.allclose(out, ref, atol=1e-4, rtol=1e-4), \
                f"mismatch (nonlin={nonlin}, mask={'None' if m is None else 'set'})"

    # 2) Force multi-tile S reduction + multi-tile B (S/B padding folded in mask).
    x, mask, w1, b1, w2, b2 = _make_inputs(10, 300, 32, 8, jnp.float32)
    for nonlin in (False, True):
        out = jax.block_until_ready(
            linear_head(x, w1, b1, w2, b2, mask=mask, nonlin=nonlin,
                        max_tb=8, max_ts=128))
        ref = _reference(x, w1, b1, w2, b2, mask=mask, nonlin=nonlin)
        assert jnp.allclose(out, ref, atol=1e-4, rtol=1e-4), \
            f"tiled mismatch (nonlin={nonlin})"

    # 3) bf16 activations: bf16 MXU passes, f32 accumulation.
    x, mask, w1, b1, w2, b2 = _make_inputs(4, 384, 64, 8, jnp.bfloat16)
    out = jax.block_until_ready(
        linear_head(x, w1, b1, w2, b2, mask=mask, nonlin=True, max_ts=128))
    ref = _reference(x.astype(jnp.float32), w1, b1, w2, b2, mask=mask, nonlin=True)
    assert jnp.allclose(out.astype(jnp.float32), ref, atol=5e-2, rtol=5e-2), \
        "bf16 mismatch"

    print("KERNEL_OK")
</pallas_src>

<mosaic_0001>
module attributes {stable_mosaic.version = 11 : i64} {
  func.func @_linear_head_kernel(%arg0: i32, %arg1: i32, %arg2: memref<2x10x32xf32, #tpu.memory_space<vmem>>, %arg3: memref<2x10xf32, #tpu.memory_space<vmem>>, %arg4: memref<2x1xf32, #tpu.memory_space<vmem>>, %arg5: memref<1x32xf32, #tpu.memory_space<vmem>>, %arg6: memref<1x128xf32, #tpu.memory_space<vmem>>, %arg7: memref<32x32xf32, #tpu.memory_space<any>>, %arg8: memref<32x128xf32, #tpu.memory_space<any>>, %arg9: memref<2x128xf32, #tpu.memory_space<vmem>>, %arg10: memref<32x32xf32, #tpu.memory_space<vmem>>, %arg11: memref<32x128xf32, #tpu.memory_space<vmem>>, %arg12: memref<2x!tpu.dma_semaphore, #tpu.memory_space<semaphore_mem>>, %arg13: memref<2x32xf32, #tpu.memory_space<vmem>>) attributes {dimension_semantics = [#tpu.dimension_semantics<parallel>, #tpu.dimension_semantics<arbitrary>], iteration_bounds = array<i64: 1, 1>, scalar_prefetch = 0 : i64, scratch_operands = 4 : i64, tpu.core_type = #tpu.core_type<tc>, window_params = [{transform_indices = @transform_0, window_bounds = array<i64: 2, 10, 32>}, {transform_indices = @transform_1, window_bounds = array<i64: 2, 10>}, {transform_indices = @transform_2, window_bounds = array<i64: 2, 1>}, {pipeline_mode = #tpu.pipeline_mode<synchronous>, transform_indices = @transform_3, window_bounds = array<i64: 1, 32>}, {pipeline_mode = #tpu.pipeline_mode<synchronous>, transform_indices = @transform_4, window_bounds = array<i64: 1, 128>}, {}, {}, {transform_indices = @transform_7, window_bounds = array<i64: 2, 128>}]} {
    %c0_i32 = arith.constant 0 : i32
    %0 = arith.cmpi eq, %arg1, %c0_i32 : i32
    %1 = arith.extui %0 : i1 to i32
    %c0_i32_0 = arith.constant 0 : i32
    %2 = arith.cmpi ne, %1, %c0_i32_0 : i32
    scf.if %2 {
      %cst_11 = arith.constant 0.000000e+00 : f32
      %15 = vector.broadcast %cst_11 : f32 to vector<2x32xf32>
      %c0_12 = arith.constant 0 : index
      %c0_13 = arith.constant 0 : index
      %16 = vector.load %arg13[%c0_12, %c0_13] : memref<2x32xf32, #tpu.memory_space<vmem>>, vector<2x32xf32>
      tpu.vector_store %arg13[%c0_12, %c0_13], %15 {strides = array<i32>} : memref<2x32xf32, #tpu.memory_space<vmem>>, vector<2x32xf32>,
      %c0_i32_14 = arith.constant 0 : i32
      %17 = tpu.memref_slice %arg12[%c0_i32_14] : memref<2x!tpu.dma_semaphore, #tpu.memory_space<semaphore_mem>> -> memref<1x!tpu.dma_semaphore, #tpu.memory_space<semaphore_mem>>
      %18 = tpu.memref_squeeze %17 : memref<1x!tpu.dma_semaphore, #tpu.memory_space<semaphore_mem>> -> memref<!tpu.dma_semaphore, #tpu.memory_space<semaphore_mem>>
      tpu.enqueue_dma source(%arg7 : memref<32x32xf32, #tpu.memory_space<any>>) target(%arg10 : memref<32x32xf32, #tpu.memory_space<vmem>>) target_semaphore(%18 : memref<!tpu.dma_semaphore, #tpu.memory_space<semaphore_mem>>)
      %c1_i32 = arith.constant 1 : i32
      %19 = tpu.memref_slice %arg12[%c1_i32] : memref<2x!tpu.dma_semaphore, #tpu.memory_space<semaphore_mem>> -> memref<1x!tpu.dma_semaphore, #tpu.memory_space<semaphore_mem>>
      %20 = tpu.memref_squeeze %19 : memref<1x!tpu.dma_semaphore, #tpu.memory_space<semaphore_mem>> -> memref<!tpu.dma_semaphore, #tpu.memory_space<semaphore_mem>>
      tpu.enqueue_dma source(%arg8 : memref<32x128xf32, #tpu.memory_space<any>>) target(%arg11 : memref<32x128xf32, #tpu.memory_space<vmem>>) target_semaphore(%20 : memref<!tpu.dma_semaphore, #tpu.memory_space<semaphore_mem>>)
    } else {
    }
    %c0 = arith.constant 0 : index
    %c0_1 = arith.constant 0 : index
    %3 = vector.load %arg3[%c0, %c0_1] : memref<2x10xf32, #tpu.memory_space<vmem>>, vector<2x10xf32>
    %c0_2 = arith.constant 0 : index
    %c0_3 = arith.constant 0 : index
    %c0_4 = arith.constant 0 : index
    %4 = vector.load %arg2[%c0_2, %c0_3, %c0_4] : memref<2x10x32xf32, #tpu.memory_space<vmem>>, vector<2x10x32xf32>
    %5 = vector.shape_cast %3 : vector<2x10xf32> to vector<2x10x1xf32>
    %6 = vector.broadcast %5 : vector<2x10x1xf32> to vector<2x10x32xf32>
    %7 = arith.mulf %4, %6 : vector<2x10x32xf32>
    %c0_5 = arith.constant 0 : index
    %c0_6 = arith.constant 0 : index
    %8 = vector.load %arg13[%c0_5, %c0_6] : memref<2x32xf32, #tpu.memory_space<vmem>>, vector<2x32xf32>
    %cst = arith.constant dense<0.000000e+00> : vector<2x32xf32>
    %9 = vector.multi_reduction <add>, %7, %cst [1] : vector<2x10x32xf32> to vector<2x32xf32>
    %10 = arith.addf %8, %9 : vector<2x32xf32>
    %c0_7 = arith.constant 0 : index
    %c0_8 = arith.constant 0 : index
    %11 = vector.load %arg13[%c0_7, %c0_8] : memref<2x32xf32, #tpu.memory_space<vmem>>, vector<2x32xf32>
    tpu.vector_store %arg13[%c0_7, %c0_8], %10 {strides = array<i32>} : memref<2x32xf32, #tpu.memory_space<vmem>>, vector<2x32xf32>,
    %c0_i32_9 = arith.constant 0 : i32
    %12 = arith.cmpi eq, %arg1, %c0_i32_9 : i32
    %13 = arith.extui %12 : i1 to i32
    %c0_i32_10 = arith.constant 0 : i32
    %14 = arith.cmpi ne, %13, %c0_i32_10 : i32
    scf.if %14 {
      %c0_i32_11 = arith.constant 0 : i32
      %15 = tpu.memref_slice %arg12[%c0_i32_11] : memref<2x!tpu.dma_semaphore, #tpu.memory_space<semaphore_mem>> -> memref<1x!tpu.dma_semaphore, #tpu.memory_space<semaphore_mem>>
      %16 = tpu.memref_squeeze %15 : memref<1x!tpu.dma_semaphore, #tpu.memory_space<semaphore_mem>> -> memref<!tpu.dma_semaphore, #tpu.memory_space<semaphore_mem>>
      tpu.wait_dma2 semaphore(%16 : memref<!tpu.dma_semaphore, #tpu.memory_space<semaphore_mem>>) src(%arg7 : memref<32x32xf32, #tpu.memory_space<any>>) dst(%arg10 : memref<32x32xf32, #tpu.memory_space<vmem>>)
      %c1_i32 = arith.constant 1 : i32
      %17 = tpu.memref_slice %arg12[%c1_i32] : memref<2x!tpu.dma_semaphore, #tpu.memory_space<semaphore_mem>> -> memref<1x!tpu.dma_semaphore, #tpu.memory_space<semaphore_mem>>
      %18 = tpu.memref_squeeze %17 : memref<1x!tpu.dma_semaphore, #tpu.memory_space<semaphore_mem>> -> memref<!tpu.dma_semaphore, #tpu.memory_space<semaphore_mem>>
      tpu.wait_dma2 semaphore(%18 : memref<!tpu.dma_semaphore, #tpu.memory_space<semaphore_mem>>) src(%arg8 : memref<32x128xf32, #tpu.memory_space<any>>) dst(%arg11 : memref<32x128xf32, #tpu.memory_space<vmem>>)
      %c0_12 = arith.constant 0 : index
      %c0_13 = arith.constant 0 : index
      %19 = vector.load %arg13[%c0_12, %c0_13] : memref<2x32xf32, #tpu.memory_space<vmem>>, vector<2x32xf32>
      %c0_14 = arith.constant 0 : index
      %c0_15 = arith.constant 0 : index
      %20 = vector.load %arg4[%c0_14, %c0_15] : memref<2x1xf32, #tpu.memory_space<vmem>>, vector<2x1xf32>
      %21 = vector.broadcast %20 : vector<2x1xf32> to vector<2x32xf32>
      %22 = arith.mulf %19, %21 : vector<2x32xf32>
      %c0_16 = arith.constant 0 : index
      %c0_17 = arith.constant 0 : index
      %23 = vector.load %arg10[%c0_16, %c0_17] : memref<32x32xf32, #tpu.memory_space<vmem>>, vector<32x32xf32>
      %cst_18 = arith.constant dense<0.000000e+00> : vector<2x32xf32>
      %24 = tpu.matmul %22, %23, %cst_18 {dimension_numbers = #tpu.dot_dimension_numbers<[1], [0], [0], [1], [0, 0, 1, 1], [], []>} : vector<2x32xf32>, vector<32x32xf32>, vector<2x32xf32> -> vector<2x32xf32>
      %c0_19 = arith.constant 0 : index
      %c0_20 = arith.constant 0 : index
      %25 = vector.load %arg5[%c0_19, %c0_20] : memref<1x32xf32, #tpu.memory_space<vmem>>, vector<1x32xf32>
      %26 = vector.broadcast %25 : vector<1x32xf32> to vector<2x32xf32>
      %27 = arith.addf %24, %26 : vector<2x32xf32>
      %c0_21 = arith.constant 0 : index
      %c0_22 = arith.constant 0 : index
      %28 = vector.load %arg11[%c0_21, %c0_22] : memref<32x128xf32, #tpu.memory_space<vmem>>, vector<32x128xf32>
      %cst_23 = arith.constant dense<0.000000e+00> : vector<2x128xf32>
      %29 = tpu.matmul %27, %28, %cst_23 {dimension_numbers = #tpu.dot_dimension_numbers<[1], [0], [0], [1], [0, 0, 1, 1], [], []>} : vector<2x32xf32>, vector<32x128xf32>, vector<2x128xf32> -> vector<2x128xf32>
      %c0_24 = arith.constant 0 : index
      %c0_25 = arith.constant 0 : index
      %30 = vector.load %arg6[%c0_24, %c0_25] : memref<1x128xf32, #tpu.memory_space<vmem>>, vector<1x128xf32>
      %31 = vector.broadcast %30 : vector<1x128xf32> to vector<2x128xf32>
      %32 = arith.addf %29, %31 : vector<2x128xf32>
      %c0_26 = arith.constant 0 : index
      %c0_27 = arith.constant 0 : index
      %33 = vector.load %arg9[%c0_26, %c0_27] : memref<2x128xf32, #tpu.memory_space<vmem>>, vector<2x128xf32>
      tpu.vector_store %arg9[%c0_26, %c0_27], %32 {strides = array<i32>} : memref<2x128xf32, #tpu.memory_space<vmem>>, vector<2x128xf32>,
    } else {
    }
    return
  }
  func.func @transform_0(%arg0: i32, %arg1: i32) -> (i32, i32, i32) {
    %c0_i32 = arith.constant 0 : i32
    %c0_i32_0 = arith.constant 0 : i32
    return %arg0, %arg1, %c0_i32 : i32, i32, i32
  }
  func.func @transform_1(%arg0: i32, %arg1: i32) -> (i32, i32) {
    %c0_i32 = arith.constant 0 : i32
    return %arg0, %arg1 : i32, i32
  }
  func.func @transform_2(%arg0: i32, %arg1: i32) -> (i32, i32) {
    %c0_i32 = arith.constant 0 : i32
    %c0_i32_0 = arith.constant 0 : i32
    return %arg0, %c0_i32 : i32, i32
  }
  func.func @transform_3(%arg0: i32, %arg1: i32) -> (i32, i32) {
    %c0_i32 = arith.constant 0 : i32
    %c0_i32_0 = arith.constant 0 : i32
    %c0_i32_1 = arith.constant 0 : i32
    return %c0_i32, %c0_i32_0 : i32, i32
  }
  func.func @transform_4(%arg0: i32, %arg1: i32) -> (i32, i32) {
    %c0_i32 = arith.constant 0 : i32
    %c0_i32_0 = arith.constant 0 : i32
    %c0_i32_1 = arith.constant 0 : i32
    return %c0_i32, %c0_i32_0 : i32, i32
  }
  func.func @transform_7(%arg0: i32, %arg1: i32) -> (i32, i32) {
    %c0_i32 = arith.constant 0 : i32
    %c0_i32_0 = arith.constant 0 : i32
    return %arg0, %c0_i32 : i32, i32
  }
}

</mosaic_0001>

<llo_original>
// kernel: tpu_custom_call.1
$region0: #{tpu_custom_call.1}
  #allocation0 [shape = 'u32[]', space=smem, size = 0x4, offset = 0x4, fixed_abs, tag = 'smem constant byte address 0x4 - core index']
  #allocation1 [shape = 'u32[72,128]{1,0:T(1,128)}', space=vmem, size = 0x9000, scoped, tag = 'internal scratch']
  #allocation2 [shape = 'f32[32,32]{1,0:T(8,128)}', space=vmem, size = 0x4000, scoped, tag = 'scratch operand']
  #allocation3 [shape = 'f32[32,128]{1,0:T(8,128)}', space=vmem, size = 0x4000, scoped, tag = 'scratch operand']
  #allocation4 [shape = 's32[2]{0}', space=sflag, size = 0x8, scoped, tag = 'scratch operand']
  #allocation5 [shape = 'f32[2,32]{1,0:T(2,128)}', space=vmem, size = 0x400, scoped, tag = 'scratch operand']
  #allocation8 [shape = 's32[]', space=sflag, size = 0x4, offset = 0, fixed_abs, tag = 'sflag constant byte address 0x0 - dummy sync flag']
  #allocation9 [shape = 's32[]', space=sflag, size = 0x4, offset = 0, fixed_abs, tag = 'sflag constant byte address 0x0 - dummy sync flag']
  #allocation10 [shape = 's32[]', space=sflag, size = 0x4, offset = 0, fixed_abs, tag = 'sflag constant byte address 0x0 - dummy sync flag']
  #allocation11 [shape = 'u32[]', space=smem, size = 0x4, offset = 0x44, fixed_abs, tag = 'smem constant byte address 0x44 - assertion arg 0']
  #allocation12 [shape = 'u32[]', space=smem, size = 0x4, offset = 0x48, fixed_abs, tag = 'smem constant byte address 0x48 - assertion arg 1']
  %s0 = inlined_call_operand.vmem [shape: f32[2,10,32], index: 0, kind: input, shape index: {}]
  %s1 = inlined_call_operand.vmem [shape: f32[2,10], index: 1, kind: input, shape index: {}]
  %s2 = inlined_call_operand.vmem [shape: f32[2,1], index: 2, kind: input, shape index: {}]
  %s3 = inlined_call_operand.vmem [shape: f32[1,32], index: 3, kind: input, shape index: {}]
  %s4 = inlined_call_operand.vmem [shape: f32[1,128], index: 4, kind: input, shape index: {}]
  %s5 = inlined_call_operand.vmem [shape: f32[32,32], index: 5, kind: input, shape index: {}]
  %s6 = inlined_call_operand.hbm [shape: f32[32,128], index: 6, kind: input, shape index: {}]
  %s7 = inlined_call_operand.hbm [shape: f32[2,128], index: 7, kind: output, shape index: {}]
  %s8 = sld [smem:[#allocation0]]
  $region61: #{tpu_custom_call.1} parent=0
    _
  %s10 = ssub.s32 1, %s8
  %s11 = scalar_select 0, %s10, %s8
  $region1: #{tpu_custom_call.1} parent=0
    #allocation6 [shape = 'u8[1024]{0}', space=vmem, size = 0x400, scoped, tag = 'output window, operand 0, single buffered']
    #allocation7 [shape = 's32[1]{0}', space=sflag, size = 0x4, scoped, tag = 'scoped memory for tpu_custom_call.1']
    %12 = vsyncpa [#allocation7], 0
    // Predicated region
    $region2: #{tpu_custom_call.1} parent=1 // pred_check
      _
    $region3: #{tpu_custom_call.1} parent=1 // pred_check_branch
      %14 = sbr.rel (0) target = $region5
    $region4: #{tpu_custom_call.1} parent=1 // pred_region
      _
    $region5: #{tpu_custom_call.1} parent=1 // pred_fallthru
      _
    // Predicated region
    $region6: #{tpu_custom_call.1} parent=1 // pred_check
      _
    $region7: #{tpu_custom_call.1} parent=1 // pred_check_branch
      %16 = sbr.rel (0) target = $region9
    $region8: #{tpu_custom_call.1} parent=1 // pred_region
      _
    $region9: #{tpu_custom_call.1} parent=1 // pred_fallthru
      _
    // Predicated region
    $region10: #{tpu_custom_call.1} parent=1 // pred_check
      _
    $region11: #{tpu_custom_call.1} parent=1 // pred_check_branch
      %18 = sbr.rel (0) target = $region13
    $region12: #{tpu_custom_call.1} parent=1 // pred_region
      _
    $region13: #{tpu_custom_call.1} parent=1 // pred_fallthru
      _
    // Predicated region
    $region14: #{tpu_custom_call.1} parent=1 // pred_check
      _
    $region15: #{tpu_custom_call.1} parent=1 // pred_check_branch
      %20 = sbr.rel (0) target = $region17
    $region16: #{tpu_custom_call.1} parent=1 // pred_region
      _
    $region17: #{tpu_custom_call.1} parent=1 // pred_fallthru
      _
    // Predicated region
    $region18: #{tpu_custom_call.1} parent=1 // pred_check
      _
    $region19: #{tpu_custom_call.1} parent=1 // pred_check_branch
      %22 = sbr.rel (0) target = $region21
    $region20: #{tpu_custom_call.1} parent=1 // pred_region
      _
    $region21: #{tpu_custom_call.1} parent=1 // pred_fallthru
      _
    %p23 = scmp.eq.s32.totalorder 0, 0
    // Predicated region
    $region22: #{tpu_custom_call.1} parent=1 // pred_check
      %p24 = pneg %p23
    $region23: #{tpu_custom_call.1} parent=1 // pred_check_branch
      %26 = sbr.rel (%p24) target = $region25
    $region24: #{tpu_custom_call.1} parent=1 // pred_region
      %vm27 = vcmask 254976
      %28 = vst.msk [vmem:[#allocation5] sm:$0x3] %vm27, 0.0
      // Predicated region
      $region26: #{tpu_custom_call.1} parent=24 // pred_check
        _
      $region27: #{tpu_custom_call.1} parent=24 // pred_check_branch
        %30 = sbr.rel (0) target = $region29
      $region28: #{tpu_custom_call.1} parent=24 // pred_region
        loop: start=0, step=1, limit=1
        $region30: #{tpu_custom_call.1} parent=28 // loop_pre_header
          _
        $region31: #{tpu_custom_call.1} parent=28 // loop_header
          %s32 = sphi 0, %s36
          %p33 = scmp.ge.s32.totalorder %s32, 1
          %s37 = sphi %s5, %s5
          %s38 = sphi [#allocation2], [#allocation2]
        $region32: #{tpu_custom_call.1} parent=28 // loop_header_branch
          %35 = sbr.rel (%p33) target = $region36
        $region33: #{tpu_custom_call.1} parent=28 // loop_body
          %v39 = vld [vmem:[%s37] sm:$0xff]
          %40 = vst [vmem:[%s38] sm:$0xff] %v39
          %v41 = vld [vmem:[%s37 + $0x8] sm:$0xff]
          %42 = vst [vmem:[%s38 + $0x8] sm:$0xff] %v41
          %v43 = vld [vmem:[%s37 + $0x10] sm:$0xff]
          %44 = vst [vmem:[%s38 + $0x10] sm:$0xff] %v43
          %v45 = vld [vmem:[%s37 + $0x18] sm:$0xff]
          %46 = vst [vmem:[%s38 + $0x18] sm:$0xff] %v45
        $region34: #{tpu_custom_call.1} parent=28 // loop_footer
          %s36 = sadd.s32 1, %s32
        $region35: #{tpu_custom_call.1} parent=28 // loop_footer_branch
          %31 = sbr.rel target = $region31
        $region36: #{tpu_custom_call.1} parent=28 // loop_exit
          _
      $region29: #{tpu_custom_call.1} parent=24 // pred_fallthru
        _
      // Predicated region
      $region37: #{tpu_custom_call.1} parent=24 // pred_check
        _
      $region38: #{tpu_custom_call.1} parent=24 // pred_check_branch
        %48 = sbr.rel target = $region40
      $region39: #{tpu_custom_call.1} parent=24 // pred_region
        _
      $region40: #{tpu_custom_call.1} parent=24 // pred_fallthru
        _
      // Predicated region
      $region41: #{tpu_custom_call.1} parent=24 // pred_check
        _
      $region42: #{tpu_custom_call.1} parent=24 // pred_check_branch
        %51 = sbr.rel (0) target = $region44
      $region43: #{tpu_custom_call.1} parent=24 // pred_region
        %52 = vsyncadd [#allocation4], 512
      $region44: #{tpu_custom_call.1} parent=24 // pred_fallthru
        _
      %s53 = scalar_lea.sflag [#allocation4], 1
      // Predicated region
      $region45: #{tpu_custom_call.1} parent=24 // pred_check
        _
      $region46: #{tpu_custom_call.1} parent=24 // pred_check_branch
        %55 = sbr.rel target = $region48
      $region47: #{tpu_custom_call.1} parent=24 // pred_region
        %56 = sst [smem:[#allocation11]] [#allocation10]
        %57 = sst [smem:[#allocation12]] [#allocation9]
      $region48: #{tpu_custom_call.1} parent=24 // pred_fallthru
        _
      %59 = shalt.err (0)
      %s61 = sshll.u32 %s6, 4
      %s62 = int_to_ptr.hbm [resolvable:$true] %s61
      %s63 = sshll.u32 [#allocation3], 4
      %s64 = int_to_ptr.vmem [resolvable:$true] %s63
      %66 = dma.hbm_to_vmem [thread:$0]  %s62, 512, %s64, %s53
    $region25: #{tpu_custom_call.1} parent=1 // pred_fallthru
      _
    %v67 = vld [vmem:[%s1] sm:$0x3]
    %v68 = vld [vmem:[%s0] sm:$0xff]
    %v69 = vld [vmem:[%s0 + $0x8] sm:$0x3]
    %v70 = vld [vmem:[%s0 + $0x10] sm:$0xff]
    %v71 = vld [vmem:[%s0 + $0x18] sm:$0x3]
    %v72 = vperm.slane %v67, 0
    %v73 = vlaneseq
    %v74 = vshrl.u32 %v73, 7
    %76 = vset.pattern.permute.xlu0 %v74
    %77 = vperm.xlu0 %76, %v72
    %v78 = vpop.permute.xlu0 %77
    %v79 = vlaneseq
    %v80 = vshrl.u32 %v79, 7
    %v81 = vadd.s32 %v80, 8
    %82 = vset.pattern.permute.xlu0 %v81
    %83 = vperm.xlu0 %82, %v72
    %v84 = vpop.permute.xlu0 %83
    %v85 = vperm.slane %v67, 1
    %v86 = vlaneseq
    %v87 = vshrl.u32 %v86, 7
    %89 = vset.pattern.permute.xlu0 %v87
    %90 = vperm.xlu0 %89, %v85
    %v91 = vpop.permute.xlu0 %90
    %v92 = vlaneseq
    %v93 = vshrl.u32 %v92, 7
    %v94 = vadd.s32 %v93, 8
    %95 = vset.pattern.permute.xlu0 %v94
    %96 = vperm.xlu0 %95, %v85
    %v97 = vpop.permute.xlu0 %96
    %v98 = vmul.f32 %v68, %v78
    %v99 = vmul.f32 %v69, %v84
    %v100 = vmul.f32 %v70, %v91
    %v101 = vmul.f32 %v71, %v97
    %v102 = vld [vmem:[#allocation5] sm:$0x3]
    %vm103 = vcmask 261120
    %v104 = vsel %vm103, %v98, 0.0
    %vm105 = vcmask 254976
    %v106 = vsel %vm105, %v99, 0.0
    %v107 = vadd.f32 %v104, %v106
    %v108 = vrot.slane %v107, 4
    %v109 = vadd.f32 %v107, %v108
    %v110 = vrot.slane %v109, 2
    %v111 = vadd.f32 %v109, %v110
    %v112 = vrot.slane %v111, 1
    %v113 = vadd.f32 %v111, %v112
    %v114 = vsel %vm103, %v100, 0.0
    %v115 = vsel %vm105, %v101, 0.0
    %v116 = vadd.f32 %v114, %v115
    %v117 = vrot.slane %v116, 4
    %v118 = vadd.f32 %v116, %v117
    %v119 = vrot.slane %v118, 2
    %v120 = vadd.f32 %v118, %v119
    %v121 = vrot.slane %v120, 1
    %v122 = vadd.f32 %v120, %v121
    %vm125 = vcmask 1041409
    %v126 = vsel %vm125, %v122, %v113
    %v128 = vadd.f32 %v102, %v126
    %129 = vst.msk [vmem:[#allocation5] sm:$0x3] %vm105, %v128
    // Predicated region
    $region49: #{tpu_custom_call.1} parent=1 // pred_check
      %p130 = pneg %p23
    $region50: #{tpu_custom_call.1} parent=1 // pred_check_branch
      %132 = sbr.rel (%p130) target = $region52
    $region51: #{tpu_custom_call.1} parent=1 // pred_region
      %s133 = smul.u32 32, 1
      %s134 = sshll.u32 %s133, 4
      %135 = dma.done [#allocation4], %s134
      %s136 = scalar_lea.sflag [#allocation4], 1
      %s137 = sshll.u32 %s133, 4
      %138 = dma.done %s136, %s137
      %v139 = vld [vmem:[#allocation5] sm:$0x3]
      %v140 = vld [vmem:[%s2] sm:$0x3]
      %142 = vset.pattern.permute.xlu0 0
      %143 = vperm.xlu0 %142, %v140
      %v144 = vpop.permute.xlu0 %143
      %v146 = vmul.f32 %v139, %v144
      %v147 = vld [vmem:[#allocation2] sm:$0xff]
      %v148 = vld [vmem:[#allocation2 + $0x8] sm:$0xff]
      %v149 = vld [vmem:[#allocation2 + $0x10] sm:$0xff]
      %v150 = vld [vmem:[#allocation2 + $0x18] sm:$0xff]
      %v151 = vld [vmem:[%s3] sm:$0x1]
      %v153 = vperm.slane %v151, 0
      %v156 = vsel %vm103, %v146, 0
      %158 = vmatpush.msra.mxu0 0.0
      %159 = vmatpush.msra.mxu0 0.0
      %160 = vmatpush.msra.mxu0 0.0
      %161 = vmatpush.msra.mxu0 0.0
      %162 = vmatpush.msra.mxu0 0.0
      %163 = vmatpush.msra.mxu0 0.0
      %164 = vmatpush.msra.mxu0 0.0
      %165 = vmatpush.msra.mxu0 0.0
      %166 = vmatpush.msra.mxu0 0.0
      %167 = vmatpush.msra.mxu0 0.0
      %168 = vmatpush.msra.mxu0 0.0
      %169 = vmatpush.msra.mxu0 0.0
      %170 = vmatpush.msra.mxu0 %v150
      %171 = vmatpush.msra.mxu0 %v149
      %172 = vmatpush.msra.mxu0 %v148
      %173 = vmatpush.msra.mxu0 %v147
      %174 = vmatmul.f32.gmra.mxu0 %v156
      %v175 = vpop.f32.mrf.mxu0
      %v176 = vadd.f32 %v153, %v175
      %177 = vdwg.mxu0
      %v178 = vld [vmem:[#allocation3] sm:$0xff]
      %v179 = vld [vmem:[#allocation3 + $0x8] sm:$0xff]
      %v180 = vld [vmem:[#allocation3 + $0x10] sm:$0xff]
      %v181 = vld [vmem:[#allocation3 + $0x18] sm:$0xff]
      %v182 = vld [vmem:[%s4] sm:$0x1]
      %v184 = vperm.slane %v182, 0
      %v187 = vsel %vm103, %v176, 0
      %189 = vmatpush.msra.mxu0 0.0
      %190 = vmatpush.msra.mxu0 0.0
      %191 = vmatpush.msra.mxu0 0.0
      %192 = vmatpush.msra.mxu0 0.0
      %193 = vmatpush.msra.mxu0 0.0
      %194 = vmatpush.msra.mxu0 0.0
      %195 = vmatpush.msra.mxu0 0.0
      %196 = vmatpush.msra.mxu0 0.0
      %197 = vmatpush.msra.mxu0 0.0
      %198 = vmatpush.msra.mxu0 0.0
      %199 = vmatpush.msra.mxu0 0.0
      %200 = vmatpush.msra.mxu0 0.0
      %201 = vmatpush.msra.mxu0 %v181
      %202 = vmatpush.msra.mxu0 %v180
      %203 = vmatpush.msra.mxu0 %v179
      %204 = vmatpush.msra.mxu0 %v178
      %205 = vmatmul.f32.gmra.mxu0 %v187
      %v206 = vpop.f32.mrf.mxu0
      %v207 = vadd.f32 %v184, %v206
      %208 = vdwg.mxu0
      %209 = vst [vmem:[#allocation6] sm:$0x3] %v207
    $region52: #{tpu_custom_call.1} parent=1 // pred_fallthru
      _
    // Predicated region
    $region53: #{tpu_custom_call.1} parent=1 // pred_check
      _
    $region54: #{tpu_custom_call.1} parent=1 // pred_check_branch
      %211 = sbr.rel (0) target = $region56
    $region55: #{tpu_custom_call.1} parent=1 // pred_region
      %213 = vsyncadd [#allocation7], 0
      %s215 = sshll.u32 [#allocation6], 4
      %s216 = int_to_ptr.vmem [resolvable:$true] %s215
      %s217 = sshll.u32 %s7, 4
      %s218 = int_to_ptr.hbm [resolvable:$true] %s217
      %220 = dma.vmem_to_hbm [thread:$0]  %s216, 32, %s218, [#allocation7]
    $region56: #{tpu_custom_call.1} parent=1 // pred_fallthru
      _
    // Predicated region
    $region57: #{tpu_custom_call.1} parent=1 // pred_check
      _
    $region58: #{tpu_custom_call.1} parent=1 // pred_check_branch
      %222 = sbr.rel (0) target = $region60
    $region59: #{tpu_custom_call.1} parent=1 // pred_region
      %224 = dma.done [#allocation7], 32
    $region60: #{tpu_custom_call.1} parent=1 // pred_fallthru
      _
    %225 = vsyncpa [#allocation7], 1
  %226 = vsyncmov [#allocation4]
  %s227 = vpop.sfrf %226
  %p228 = scmp.eq.s32.totalorder %s227, 0
  %p229 = pneg %p228
  %231 = shalt.err (%p229)
  %s232 = scalar_lea.sflag [#allocation4], 1
  %233 = vsyncmov %s232
  %s234 = vpop.sfrf %233
  %p235 = scmp.eq.s32.totalorder %s234, 0
  %p236 = pneg %p235
  %238 = shalt.err (%p236)

</llo_original>
